<compile_context>
chip_gen: v7x
topology: tpu7x:2x2x1
jax: 0.10.0
libtpu: 0.0.40
codegen_flags: <defaults>
</compile_context>

<pallas_src>
import math

import jax
import jax.numpy as jnp
from jax.experimental import pallas as pl
from jax.experimental.pallas import tpu as pltpu

STATE_DIM = 8
ACTION_DIM = 2
HIDDEN_DIM = 256
NOISE_SIZE = 0.1


def _round_up(x, m):
    return (x + m - 1) // m * m


def actor_kernel(x_ref, w1_ref, w2_ref, w3_ref, b12_ref, b3_ref, o_ref):
    """Transposed dataflow: activations are [features, TB] (batch on lanes).

    x_ref  : [STATE_DIM, TB]   f32
    w*_ref : [out, in]         bf16 (native nn.Linear layout, VMEM-resident)
    b12_ref: [2*H, 1]          f32 (b1 | b2 packed along sublanes)
    b3_ref : [ACTION_DIM, 1]   f32 (fc3 bias with per-call noise already folded in)
    o_ref  : [ACTION_DIM, TB]  f32 (lane-dense, only the real action rows hit HBM)
    """
    H = HIDDEN_DIM
    b1 = b12_ref[:H, :]          # [H, 1]  (static, 8-aligned sublane slices)
    b2 = b12_ref[H:, :]          # [H, 1]

    # fc1 + ReLU  (bf16 MXU inputs, f32 accumulate; elementwise stays f32)
    h1 = jnp.dot(w1_ref[...], x_ref[...].astype(jnp.bfloat16),
                 preferred_element_type=jnp.float32) + b1
    h1 = jnp.maximum(h1, 0.0)
    # fc2 + ReLU
    h2 = jnp.dot(w2_ref[...], h1.astype(jnp.bfloat16),
                 preferred_element_type=jnp.float32) + b2
    h2 = jnp.maximum(h2, 0.0)
    # fc3 + (bias + noise), tanh — only ACTION_DIM sublanes of output
    y = jnp.dot(w3_ref[...], h2.astype(jnp.bfloat16),
                preferred_element_type=jnp.float32) + b3_ref[...]
    o_ref[...] = jnp.tanh(y).astype(o_ref.dtype)


def actor_forward(state, packed_params, noise, *, block_b=2048):
    """state: [B, STATE_DIM] f32, noise: [ACTION_DIM] -> action: [B, ACTION_DIM] f32."""
    w1, w2, w3, b12, b3 = packed_params
    B = state.shape[0]

    # Batch is the lane axis: the tile must be a multiple of 128 or the full batch.
    if B <= 128:
        TB = B
    else:
        tb_cap = max(128, _round_up(block_b, 128))
        # Keep >= 2 grid steps so the "parallel" axis can shard across TCs (v7x).
        TB = min(tb_cap, _round_up(pl.cdiv(B, 2), 128))
    grid = (pl.cdiv(B, TB),)   # no batch padding: Pallas masks the partial last block

    # Fold the per-call exploration noise into the fc3 bias (one fewer DMA + vadd/tile).
    b3_eff = b3 + noise.astype(jnp.float32).reshape(ACTION_DIM, 1)

    x_t = state.astype(jnp.float32).T   # [STATE_DIM, B] — tiny XLA transpose

    out_t = pl.pallas_call(
        actor_kernel,
        out_shape=jax.ShapeDtypeStruct((ACTION_DIM, B), jnp.float32),
        grid=grid,
        in_specs=[
            pl.BlockSpec((STATE_DIM, TB), lambda i: (0, i)),   # batch-tiled input
            pl.BlockSpec(w1.shape, lambda i: (0, 0)),          # bf16 weights, VMEM-resident
            pl.BlockSpec(w2.shape, lambda i: (0, 0)),
            pl.BlockSpec(w3.shape, lambda i: (0, 0)),
            pl.BlockSpec(b12.shape, lambda i: (0, 0)),         # packed b1|b2 (one buffer)
            pl.BlockSpec(b3_eff.shape, lambda i: (0, 0)),      # b3 + noise
        ],
        out_specs=pl.BlockSpec((ACTION_DIM, TB), lambda i: (0, i)),
        compiler_params=pltpu.CompilerParams(
            dimension_semantics=("parallel",)),                # batch axis -> both TCs on v7x
    )(x_t, w1, w2, w3, b12, b3_eff)

    return out_t.T   # [B, ACTION_DIM] — 8 B/row, negligible


def init_params(key):
    """PyTorch nn.Linear default init: U(-1/sqrt(fan_in), 1/sqrt(fan_in)).
    Weights kept in native nn.Linear layout [out, in]; biases [out]."""
    dims = [(STATE_DIM, HIDDEN_DIM), (HIDDEN_DIM, HIDDEN_DIM), (HIDDEN_DIM, ACTION_DIM)]
    params = []
    for fan_in, fan_out in dims:
        key, kw, kb = jax.random.split(key, 3)
        bound = 1.0 / math.sqrt(fan_in)
        w = jax.random.uniform(kw, (fan_out, fan_in), jnp.float32, -bound, bound)
        b = jax.random.uniform(kb, (fan_out,), jnp.float32, -bound, bound)
        params += [w, b]
    return tuple(params)


def pack_params(params):
    """Kernel layout: weights bf16 [out, in]; b1|b2 packed to [2H, 1]; b3 as [A, 1]."""
    w1, b1, w2, b2, w3, b3 = params
    b12 = jnp.concatenate([b1, b2]).reshape(2 * HIDDEN_DIM, 1).astype(jnp.float32)
    return (w1.astype(jnp.bfloat16), w2.astype(jnp.bfloat16), w3.astype(jnp.bfloat16),
            b12, b3.reshape(ACTION_DIM, 1).astype(jnp.float32))


if __name__ == "__main__":
    key = jax.random.PRNGKey(0)
    kp, ks, kb, kn = jax.random.split(key, 4)

    params = init_params(kp)
    packed = pack_params(params)

    batch = 16
    state = jax.random.normal(ks, (batch, STATE_DIM), jnp.float32)
    # Per-forward exploration noise (mirrors np.random.normal(0, 1, action_dim)).
    noise = NOISE_SIZE * jax.random.normal(kn, (ACTION_DIM,), jnp.float32)

    # Small single-block call, plus a larger batch that exercises a multi-step
    # grid with a partial trailing block (B=300 -> TB=256, grid=2).
    action = actor_forward(state, packed, noise)
    state_big = jax.random.normal(kb, (300, STATE_DIM), jnp.float32)
    action_big = actor_forward(state_big, packed, noise)
    jax.block_until_ready((action, action_big))

    # Pure-JAX f32 reference (same params, same noise). bf16 MXU inputs loosen tolerance.
    def ref(s):
        w1, b1, w2, b2, w3, b3 = params
        h1 = jnp.maximum(s @ w1.T + b1, 0.0)
        h2 = jnp.maximum(h1 @ w2.T + b2, 0.0)
        return jnp.tanh(h2 @ w3.T + b3 + noise[None, :])

    assert action.shape == (batch, ACTION_DIM)
    assert action_big.shape == (300, ACTION_DIM)
    assert jnp.allclose(action, ref(state), atol=5e-2, rtol=0)
    assert jnp.allclose(action_big, ref(state_big), atol=5e-2, rtol=0)

    print("KERNEL_OK")
</pallas_src>

<mosaic_0001>
module attributes {stable_mosaic.version = 11 : i64} {
  func.func @actor_kernel(%arg0: i32, %arg1: memref<8x16xf32, #tpu.memory_space<vmem>>, %arg2: memref<256x8xbf16, #tpu.memory_space<vmem>>, %arg3: memref<256x256xbf16, #tpu.memory_space<vmem>>, %arg4: memref<2x256xbf16, #tpu.memory_space<vmem>>, %arg5: memref<512x1xf32, #tpu.memory_space<vmem>>, %arg6: memref<2x1xf32, #tpu.memory_space<vmem>>, %arg7: memref<2x16xf32, #tpu.memory_space<vmem>>) attributes {dimension_semantics = [#tpu.dimension_semantics<parallel>], iteration_bounds = array<i64: 1>, scalar_prefetch = 0 : i64, scratch_operands = 0 : i64, tpu.core_type = #tpu.core_type<tc>, window_params = [{transform_indices = @transform_0, window_bounds = array<i64: 8, 16>}, {pipeline_mode = #tpu.pipeline_mode<synchronous>, transform_indices = @transform_1, window_bounds = array<i64: 256, 8>}, {pipeline_mode = #tpu.pipeline_mode<synchronous>, transform_indices = @transform_2, window_bounds = array<i64: 256, 256>}, {pipeline_mode = #tpu.pipeline_mode<synchronous>, transform_indices = @transform_3, window_bounds = array<i64: 2, 256>}, {pipeline_mode = #tpu.pipeline_mode<synchronous>, transform_indices = @transform_4, window_bounds = array<i64: 512, 1>}, {pipeline_mode = #tpu.pipeline_mode<synchronous>, transform_indices = @transform_5, window_bounds = array<i64: 2, 1>}, {transform_indices = @transform_6, window_bounds = array<i64: 2, 16>}]} {
    %c0 = arith.constant 0 : index
    %c0_0 = arith.constant 0 : index
    %0 = vector.load %arg5[%c0, %c0_0] : memref<512x1xf32, #tpu.memory_space<vmem>>, vector<256x1xf32>
    %c256 = arith.constant 256 : index
    %c0_1 = arith.constant 0 : index
    %1 = vector.load %arg5[%c256, %c0_1] : memref<512x1xf32, #tpu.memory_space<vmem>>, vector<256x1xf32>
    %c0_2 = arith.constant 0 : index
    %c0_3 = arith.constant 0 : index
    %2 = vector.load %arg2[%c0_2, %c0_3] : memref<256x8xbf16, #tpu.memory_space<vmem>>, vector<256x8xbf16>
    %c0_4 = arith.constant 0 : index
    %c0_5 = arith.constant 0 : index
    %3 = vector.load %arg1[%c0_4, %c0_5] : memref<8x16xf32, #tpu.memory_space<vmem>>, vector<8x16xf32>
    %4 = arith.truncf %3 : vector<8x16xf32> to vector<8x16xbf16>
    %cst = arith.constant dense<0.000000e+00> : vector<256x16xf32>
    %5 = tpu.matmul %2, %4, %cst {dimension_numbers = #tpu.dot_dimension_numbers<[1], [0], [0], [1], [0, 0, 1, 1], [], []>} : vector<256x8xbf16>, vector<8x16xbf16>, vector<256x16xf32> -> vector<256x16xf32>
    %6 = vector.broadcast %0 : vector<256x1xf32> to vector<256x16xf32>
    %7 = arith.addf %5, %6 : vector<256x16xf32>
    %cst_6 = arith.constant 0.000000e+00 : f32
    %8 = vector.broadcast %cst_6 : f32 to vector<256x16xf32>
    %9 = arith.maximumf %7, %8 : vector<256x16xf32>
    %c0_7 = arith.constant 0 : index
    %c0_8 = arith.constant 0 : index
    %10 = vector.load %arg3[%c0_7, %c0_8] : memref<256x256xbf16, #tpu.memory_space<vmem>>, vector<256x256xbf16>
    %11 = arith.truncf %9 : vector<256x16xf32> to vector<256x16xbf16>
    %cst_9 = arith.constant dense<0.000000e+00> : vector<256x16xf32>
    %12 = tpu.matmul %10, %11, %cst_9 {dimension_numbers = #tpu.dot_dimension_numbers<[1], [0], [0], [1], [0, 0, 1, 1], [], []>} : vector<256x256xbf16>, vector<256x16xbf16>, vector<256x16xf32> -> vector<256x16xf32>
    %13 = vector.broadcast %1 : vector<256x1xf32> to vector<256x16xf32>
    %14 = arith.addf %12, %13 : vector<256x16xf32>
    %cst_10 = arith.constant 0.000000e+00 : f32
    %15 = vector.broadcast %cst_10 : f32 to vector<256x16xf32>
    %16 = arith.maximumf %14, %15 : vector<256x16xf32>
    %c0_11 = arith.constant 0 : index
    %c0_12 = arith.constant 0 : index
    %17 = vector.load %arg4[%c0_11, %c0_12] : memref<2x256xbf16, #tpu.memory_space<vmem>>, vector<2x256xbf16>
    %18 = arith.truncf %16 : vector<256x16xf32> to vector<256x16xbf16>
    %cst_13 = arith.constant dense<0.000000e+00> : vector<2x16xf32>
    %19 = tpu.matmul %17, %18, %cst_13 {dimension_numbers = #tpu.dot_dimension_numbers<[1], [0], [0], [1], [0, 0, 1, 1], [], []>} : vector<2x256xbf16>, vector<256x16xbf16>, vector<2x16xf32> -> vector<2x16xf32>
    %c0_14 = arith.constant 0 : index
    %c0_15 = arith.constant 0 : index
    %20 = vector.load %arg6[%c0_14, %c0_15] : memref<2x1xf32, #tpu.memory_space<vmem>>, vector<2x1xf32>
    %21 = vector.broadcast %20 : vector<2x1xf32> to vector<2x16xf32>
    %22 = arith.addf %19, %21 : vector<2x16xf32>
    %23 = math.tanh %22 : vector<2x16xf32>
    %c0_16 = arith.constant 0 : index
    %c0_17 = arith.constant 0 : index
    %24 = vector.load %arg7[%c0_16, %c0_17] : memref<2x16xf32, #tpu.memory_space<vmem>>, vector<2x16xf32>
    tpu.vector_store %arg7[%c0_16, %c0_17], %23 {strides = array<i32>} : memref<2x16xf32, #tpu.memory_space<vmem>>, vector<2x16xf32>,
    return
  }
  func.func @transform_0(%arg0: i32) -> (i32, i32) {
    %c0_i32 = arith.constant 0 : i32
    %c0_i32_0 = arith.constant 0 : i32
    return %c0_i32, %arg0 : i32, i32
  }
  func.func @transform_1(%arg0: i32) -> (i32, i32) {
    %c0_i32 = arith.constant 0 : i32
    %c0_i32_0 = arith.constant 0 : i32
    %c0_i32_1 = arith.constant 0 : i32
    return %c0_i32, %c0_i32_0 : i32, i32
  }
  func.func @transform_2(%arg0: i32) -> (i32, i32) {
    %c0_i32 = arith.constant 0 : i32
    %c0_i32_0 = arith.constant 0 : i32
    %c0_i32_1 = arith.constant 0 : i32
    return %c0_i32, %c0_i32_0 : i32, i32
  }
  func.func @transform_3(%arg0: i32) -> (i32, i32) {
    %c0_i32 = arith.constant 0 : i32
    %c0_i32_0 = arith.constant 0 : i32
    %c0_i32_1 = arith.constant 0 : i32
    return %c0_i32, %c0_i32_0 : i32, i32
  }
  func.func @transform_4(%arg0: i32) -> (i32, i32) {
    %c0_i32 = arith.constant 0 : i32
    %c0_i32_0 = arith.constant 0 : i32
    %c0_i32_1 = arith.constant 0 : i32
    return %c0_i32, %c0_i32_0 : i32, i32
  }
  func.func @transform_5(%arg0: i32) -> (i32, i32) {
    %c0_i32 = arith.constant 0 : i32
    %c0_i32_0 = arith.constant 0 : i32
    %c0_i32_1 = arith.constant 0 : i32
    return %c0_i32, %c0_i32_0 : i32, i32
  }
  func.func @transform_6(%arg0: i32) -> (i32, i32) {
    %c0_i32 = arith.constant 0 : i32
    %c0_i32_0 = arith.constant 0 : i32
    return %c0_i32, %arg0 : i32, i32
  }
}

</mosaic_0001>

<llo_original>
// kernel: tpu_custom_call.1
$region0: #{tpu_custom_call.1}
  #allocation0 [shape = 'u32[]', space=smem, size = 0x4, offset = 0x4, fixed_abs, tag = 'smem constant byte address 0x4 - core index']
  #allocation1 [shape = 'u32[144,128]{1,0:T(1,128)}', space=vmem, size = 0x12000, scoped, tag = 'internal scratch']
  %s0 = inlined_call_operand.vmem [shape: f32[8,16], index: 0, kind: input, shape index: {}]
  %s1 = inlined_call_operand.vmem [shape: bf16[256,8], index: 1, kind: input, shape index: {}]
  %s2 = inlined_call_operand.vmem [shape: bf16[256,256], index: 2, kind: input, shape index: {}]
  %s3 = inlined_call_operand.vmem [shape: bf16[2,256], index: 3, kind: input, shape index: {}]
  %s4 = inlined_call_operand.vmem [shape: f32[512,1], index: 4, kind: input, shape index: {}]
  %s5 = inlined_call_operand.vmem [shape: f32[2,1], index: 5, kind: input, shape index: {}]
  %s6 = inlined_call_operand.hbm [shape: f32[2,16], index: 6, kind: output, shape index: {}]
  %s7 = sld [smem:[#allocation0]]
  $region34: #{tpu_custom_call.1} parent=0
    _
  %s9 = ssub.s32 1, %s7
  %s10 = scalar_select 0, %s9, %s7
  $region1: #{tpu_custom_call.1} parent=0
    #allocation2 [shape = 'u8[1024]{0}', space=vmem, size = 0x400, scoped, tag = 'output window, operand 0, single buffered']
    #allocation3 [shape = 's32[1]{0}', space=sflag, size = 0x4, scoped, tag = 'scoped memory for tpu_custom_call.1']
    %11 = vsyncpa [#allocation3], 0
    // Predicated region
    $region2: #{tpu_custom_call.1} parent=1 // pred_check
      _
    $region3: #{tpu_custom_call.1} parent=1 // pred_check_branch
      %13 = sbr.rel (0) target = $region5
    $region4: #{tpu_custom_call.1} parent=1 // pred_region
      _
    $region5: #{tpu_custom_call.1} parent=1 // pred_fallthru
      _
    // Predicated region
    $region6: #{tpu_custom_call.1} parent=1 // pred_check
      _
    $region7: #{tpu_custom_call.1} parent=1 // pred_check_branch
      %15 = sbr.rel (0) target = $region9
    $region8: #{tpu_custom_call.1} parent=1 // pred_region
      _
    $region9: #{tpu_custom_call.1} parent=1 // pred_fallthru
      _
    // Predicated region
    $region10: #{tpu_custom_call.1} parent=1 // pred_check
      _
    $region11: #{tpu_custom_call.1} parent=1 // pred_check_branch
      %17 = sbr.rel (0) target = $region13
    $region12: #{tpu_custom_call.1} parent=1 // pred_region
      _
    $region13: #{tpu_custom_call.1} parent=1 // pred_fallthru
      _
    // Predicated region
    $region14: #{tpu_custom_call.1} parent=1 // pred_check
      _
    $region15: #{tpu_custom_call.1} parent=1 // pred_check_branch
      %19 = sbr.rel (0) target = $region17
    $region16: #{tpu_custom_call.1} parent=1 // pred_region
      _
    $region17: #{tpu_custom_call.1} parent=1 // pred_fallthru
      _
    // Predicated region
    $region18: #{tpu_custom_call.1} parent=1 // pred_check
      _
    $region19: #{tpu_custom_call.1} parent=1 // pred_check_branch
      %21 = sbr.rel (0) target = $region21
    $region20: #{tpu_custom_call.1} parent=1 // pred_region
      _
    $region21: #{tpu_custom_call.1} parent=1 // pred_fallthru
      _
    // Predicated region
    $region22: #{tpu_custom_call.1} parent=1 // pred_check
      _
    $region23: #{tpu_custom_call.1} parent=1 // pred_check_branch
      %23 = sbr.rel (0) target = $region25
    $region24: #{tpu_custom_call.1} parent=1 // pred_region
      _
    $region25: #{tpu_custom_call.1} parent=1 // pred_fallthru
      _
    %v25 = vld [vmem:[%s4] sm:$0xff]
    %v26 = vld [vmem:[%s4 + $0x8] sm:$0xff]
    %v27 = vld [vmem:[%s4 + $0x10] sm:$0xff]
    %v28 = vld [vmem:[%s4 + $0x18] sm:$0xff]
    %v29 = vld [vmem:[%s4 + $0x20] sm:$0xff]
    %v30 = vld [vmem:[%s4 + $0x28] sm:$0xff]
    %v31 = vld [vmem:[%s4 + $0x30] sm:$0xff]
    %v32 = vld [vmem:[%s4 + $0x38] sm:$0xff]
    %v33 = vld [vmem:[%s4 + $0x40] sm:$0xff]
    %v34 = vld [vmem:[%s4 + $0x48] sm:$0xff]
    %v35 = vld [vmem:[%s4 + $0x50] sm:$0xff]
    %v36 = vld [vmem:[%s4 + $0x58] sm:$0xff]
    %v37 = vld [vmem:[%s4 + $0x60] sm:$0xff]
    %v38 = vld [vmem:[%s4 + $0x68] sm:$0xff]
    %v39 = vld [vmem:[%s4 + $0x70] sm:$0xff]
    %v40 = vld [vmem:[%s4 + $0x78] sm:$0xff]
    %v41 = vld [vmem:[%s4 + $0x80] sm:$0xff]
    %v42 = vld [vmem:[%s4 + $0x88] sm:$0xff]
    %v43 = vld [vmem:[%s4 + $0x90] sm:$0xff]
    %v44 = vld [vmem:[%s4 + $0x98] sm:$0xff]
    %v45 = vld [vmem:[%s4 + $0xa0] sm:$0xff]
    %v46 = vld [vmem:[%s4 + $0xa8] sm:$0xff]
    %v47 = vld [vmem:[%s4 + $0xb0] sm:$0xff]
    %v48 = vld [vmem:[%s4 + $0xb8] sm:$0xff]
    %v49 = vld [vmem:[%s4 + $0xc0] sm:$0xff]
    %v50 = vld [vmem:[%s4 + $0xc8] sm:$0xff]
    %v51 = vld [vmem:[%s4 + $0xd0] sm:$0xff]
    %v52 = vld [vmem:[%s4 + $0xd8] sm:$0xff]
    %v53 = vld [vmem:[%s4 + $0xe0] sm:$0xff]
    %v54 = vld [vmem:[%s4 + $0xe8] sm:$0xff]
    %v55 = vld [vmem:[%s4 + $0xf0] sm:$0xff]
    %v56 = vld [vmem:[%s4 + $0xf8] sm:$0xff]
    %v57 = vld [vmem:[%s4 + $0x100] sm:$0xff]
    %v58 = vld [vmem:[%s4 + $0x108] sm:$0xff]
    %v59 = vld [vmem:[%s4 + $0x110] sm:$0xff]
    %v60 = vld [vmem:[%s4 + $0x118] sm:$0xff]
    %v61 = vld [vmem:[%s4 + $0x120] sm:$0xff]
    %v62 = vld [vmem:[%s4 + $0x128] sm:$0xff]
    %v63 = vld [vmem:[%s4 + $0x130] sm:$0xff]
    %v64 = vld [vmem:[%s4 + $0x138] sm:$0xff]
    %v65 = vld [vmem:[%s4 + $0x140] sm:$0xff]
    %v66 = vld [vmem:[%s4 + $0x148] sm:$0xff]
    %v67 = vld [vmem:[%s4 + $0x150] sm:$0xff]
    %v68 = vld [vmem:[%s4 + $0x158] sm:$0xff]
    %v69 = vld [vmem:[%s4 + $0x160] sm:$0xff]
    %v70 = vld [vmem:[%s4 + $0x168] sm:$0xff]
    %v71 = vld [vmem:[%s4 + $0x170] sm:$0xff]
    %v72 = vld [vmem:[%s4 + $0x178] sm:$0xff]
    %v73 = vld [vmem:[%s4 + $0x180] sm:$0xff]
    %v74 = vld [vmem:[%s4 + $0x188] sm:$0xff]
    %v75 = vld [vmem:[%s4 + $0x190] sm:$0xff]
    %v76 = vld [vmem:[%s4 + $0x198] sm:$0xff]
    %v77 = vld [vmem:[%s4 + $0x1a0] sm:$0xff]
    %v78 = vld [vmem:[%s4 + $0x1a8] sm:$0xff]
    %v79 = vld [vmem:[%s4 + $0x1b0] sm:$0xff]
    %v80 = vld [vmem:[%s4 + $0x1b8] sm:$0xff]
    %v81 = vld [vmem:[%s4 + $0x1c0] sm:$0xff]
    %v82 = vld [vmem:[%s4 + $0x1c8] sm:$0xff]
    %v83 = vld [vmem:[%s4 + $0x1d0] sm:$0xff]
    %v84 = vld [vmem:[%s4 + $0x1d8] sm:$0xff]
    %v85 = vld [vmem:[%s4 + $0x1e0] sm:$0xff]
    %v86 = vld [vmem:[%s4 + $0x1e8] sm:$0xff]
    %v87 = vld [vmem:[%s4 + $0x1f0] sm:$0xff]
    %v88 = vld [vmem:[%s4 + $0x1f8] sm:$0xff]
    %v89 = vld [vmem:[%s1] sm:$0xf]
    %v90 = vld [vmem:[%s1 + $0x4] sm:$0xf]
    %v91 = vld [vmem:[%s1 + $0x8] sm:$0xf]
    %v92 = vld [vmem:[%s1 + $0xc] sm:$0xf]
    %v93 = vld [vmem:[%s1 + $0x10] sm:$0xf]
    %v94 = vld [vmem:[%s1 + $0x14] sm:$0xf]
    %v95 = vld [vmem:[%s1 + $0x18] sm:$0xf]
    %v96 = vld [vmem:[%s1 + $0x1c] sm:$0xf]
    %v97 = vld [vmem:[%s1 + $0x20] sm:$0xf]
    %v98 = vld [vmem:[%s1 + $0x24] sm:$0xf]
    %v99 = vld [vmem:[%s1 + $0x28] sm:$0xf]
    %v100 = vld [vmem:[%s1 + $0x2c] sm:$0xf]
    %v101 = vld [vmem:[%s1 + $0x30] sm:$0xf]
    %v102 = vld [vmem:[%s1 + $0x34] sm:$0xf]
    %v103 = vld [vmem:[%s1 + $0x38] sm:$0xf]
    %v104 = vld [vmem:[%s1 + $0x3c] sm:$0xf]
    %v105 = vld [vmem:[%s1 + $0x40] sm:$0xf]
    %v106 = vld [vmem:[%s1 + $0x44] sm:$0xf]
    %v107 = vld [vmem:[%s1 + $0x48] sm:$0xf]
    %v108 = vld [vmem:[%s1 + $0x4c] sm:$0xf]
    %v109 = vld [vmem:[%s1 + $0x50] sm:$0xf]
    %v110 = vld [vmem:[%s1 + $0x54] sm:$0xf]
    %v111 = vld [vmem:[%s1 + $0x58] sm:$0xf]
    %v112 = vld [vmem:[%s1 + $0x5c] sm:$0xf]
    %v113 = vld [vmem:[%s1 + $0x60] sm:$0xf]
    %v114 = vld [vmem:[%s1 + $0x64] sm:$0xf]
    %v115 = vld [vmem:[%s1 + $0x68] sm:$0xf]
    %v116 = vld [vmem:[%s1 + $0x6c] sm:$0xf]
    %v117 = vld [vmem:[%s1 + $0x70] sm:$0xf]
    %v118 = vld [vmem:[%s1 + $0x74] sm:$0xf]
    %v119 = vld [vmem:[%s1 + $0x78] sm:$0xf]
    %v120 = vld [vmem:[%s1 + $0x7c] sm:$0xf]
    %v121 = vld [vmem:[%s0] sm:$0xff]
    %v122 = vpack.c.bf16 %v121, %v121
    %124 = vset.pattern.permute.xlu0 0
    %125 = vperm.xlu0 %124, %v25
    %v126 = vpop.permute.xlu0 %125
    %129 = vset.pattern.permute.xlu0 0
    %130 = vperm.xlu0 %129, %v26
    %v131 = vpop.permute.xlu0 %130
    %134 = vset.pattern.permute.xlu0 0
    %135 = vperm.xlu0 %134, %v27
    %v136 = vpop.permute.xlu0 %135
    %139 = vset.pattern.permute.xlu0 0
    %140 = vperm.xlu0 %139, %v28
    %v141 = vpop.permute.xlu0 %140
    %144 = vset.pattern.permute.xlu0 0
    %145 = vperm.xlu0 %144, %v29
    %v146 = vpop.permute.xlu0 %145
    %149 = vset.pattern.permute.xlu0 0
    %150 = vperm.xlu0 %149, %v30
    %v151 = vpop.permute.xlu0 %150
    %154 = vset.pattern.permute.xlu0 0
    %155 = vperm.xlu0 %154, %v31
    %v156 = vpop.permute.xlu0 %155
    %159 = vset.pattern.permute.xlu0 0
    %160 = vperm.xlu0 %159, %v32
    %v161 = vpop.permute.xlu0 %160
    %164 = vset.pattern.permute.xlu0 0
    %165 = vperm.xlu0 %164, %v33
    %v166 = vpop.permute.xlu0 %165
    %169 = vset.pattern.permute.xlu0 0
    %170 = vperm.xlu0 %169, %v34
    %v171 = vpop.permute.xlu0 %170
    %174 = vset.pattern.permute.xlu0 0
    %175 = vperm.xlu0 %174, %v35
    %v176 = vpop.permute.xlu0 %175
    %179 = vset.pattern.permute.xlu0 0
    %180 = vperm.xlu0 %179, %v36
    %v181 = vpop.permute.xlu0 %180
    %184 = vset.pattern.permute.xlu0 0
    %185 = vperm.xlu0 %184, %v37
    %v186 = vpop.permute.xlu0 %185
    %189 = vset.pattern.permute.xlu0 0
    %190 = vperm.xlu0 %189, %v38
    %v191 = vpop.permute.xlu0 %190
    %194 = vset.pattern.permute.xlu0 0
    %195 = vperm.xlu0 %194, %v39
    %v196 = vpop.permute.xlu0 %195
    %199 = vset.pattern.permute.xlu0 0
    %200 = vperm.xlu0 %199, %v40
    %v201 = vpop.permute.xlu0 %200
    %204 = vset.pattern.permute.xlu0 0
    %205 = vperm.xlu0 %204, %v41
    %v206 = vpop.permute.xlu0 %205
    %209 = vset.pattern.permute.xlu0 0
    %210 = vperm.xlu0 %209, %v42
    %v211 = vpop.permute.xlu0 %210
    %214 = vset.pattern.permute.xlu0 0
    %215 = vperm.xlu0 %214, %v43
    %v216 = vpop.permute.xlu0 %215
    %219 = vset.pattern.permute.xlu0 0
    %220 = vperm.xlu0 %219, %v44
    %v221 = vpop.permute.xlu0 %220
    %224 = vset.pattern.permute.xlu0 0
    %225 = vperm.xlu0 %224, %v45
    %v226 = vpop.permute.xlu0 %225
    %229 = vset.pattern.permute.xlu0 0
    %230 = vperm.xlu0 %229, %v46
    %v231 = vpop.permute.xlu0 %230
    %234 = vset.pattern.permute.xlu0 0
    %235 = vperm.xlu0 %234, %v47
    %v236 = vpop.permute.xlu0 %235
    %239 = vset.pattern.permute.xlu0 0
    %240 = vperm.xlu0 %239, %v48
    %v241 = vpop.permute.xlu0 %240
    %244 = vset.pattern.permute.xlu0 0
    %245 = vperm.xlu0 %244, %v49
    %v246 = vpop.permute.xlu0 %245
    %249 = vset.pattern.permute.xlu0 0
    %250 = vperm.xlu0 %249, %v50
    %v251 = vpop.permute.xlu0 %250
    %254 = vset.pattern.permute.xlu0 0
    %255 = vperm.xlu0 %254, %v51
    %v256 = vpop.permute.xlu0 %255
    %259 = vset.pattern.permute.xlu0 0
    %260 = vperm.xlu0 %259, %v52
    %v261 = vpop.permute.xlu0 %260
    %264 = vset.pattern.permute.xlu0 0
    %265 = vperm.xlu0 %264, %v53
    %v266 = vpop.permute.xlu0 %265
    %269 = vset.pattern.permute.xlu0 0
    %270 = vperm.xlu0 %269, %v54
    %v271 = vpop.permute.xlu0 %270
    %274 = vset.pattern.permute.xlu0 0
    %275 = vperm.xlu0 %274, %v55
    %v276 = vpop.permute.xlu0 %275
    %279 = vset.pattern.permute.xlu0 0
    %280 = vperm.xlu0 %279, %v56
    %v281 = vpop.permute.xlu0 %280
    %v315 = vunpack.c.l.b16 %v89
    %v316 = vunpack.c.l.b16 %v90
    %v317 = vunpack.c.l.b16 %v91
    %v318 = vunpack.c.l.b16 %v92
    %v319 = vunpack.c.l.b16 %v93
    %v320 = vunpack.c.l.b16 %v94
    %v321 = vunpack.c.l.b16 %v95
    %v322 = vunpack.c.l.b16 %v96
    %v323 = vunpack.c.l.b16 %v97
    %v324 = vunpack.c.l.b16 %v98
    %v325 = vunpack.c.l.b16 %v99
    %v326 = vunpack.c.l.b16 %v100
    %v327 = vunpack.c.l.b16 %v101
    %v328 = vunpack.c.l.b16 %v102
    %v329 = vunpack.c.l.b16 %v103
    %v330 = vunpack.c.l.b16 %v104
    %v331 = vunpack.c.l.b16 %v105
    %v332 = vunpack.c.l.b16 %v106
    %v333 = vunpack.c.l.b16 %v107
    %v334 = vunpack.c.l.b16 %v108
    %v335 = vunpack.c.l.b16 %v109
    %v336 = vunpack.c.l.b16 %v110
    %v337 = vunpack.c.l.b16 %v111
    %v338 = vunpack.c.l.b16 %v112
    %v339 = vunpack.c.l.b16 %v113
    %v340 = vunpack.c.l.b16 %v114
    %v341 = vunpack.c.l.b16 %v115
    %v342 = vunpack.c.l.b16 %v116
    %v343 = vunpack.c.l.b16 %v117
    %v344 = vunpack.c.l.b16 %v118
    %v345 = vunpack.c.l.b16 %v119
    %v346 = vunpack.c.l.b16 %v120
    %v347 = vpack.c.b16 %v316, %v315
    %v348 = vpack.c.b16 %v318, %v317
    %v349 = vpack.c.b16 %v320, %v319
    %v350 = vpack.c.b16 %v322, %v321
    %v351 = vpack.c.b16 %v324, %v323
    %v352 = vpack.c.b16 %v326, %v325
    %v353 = vpack.c.b16 %v328, %v327
    %v354 = vpack.c.b16 %v330, %v329
    %v355 = vpack.c.b16 %v332, %v331
    %v356 = vpack.c.b16 %v334, %v333
    %v357 = vpack.c.b16 %v336, %v335
    %v358 = vpack.c.b16 %v338, %v337
    %v359 = vpack.c.b16 %v340, %v339
    %v360 = vpack.c.b16 %v342, %v341
    %v361 = vpack.c.b16 %v344, %v343
    %v362 = vpack.c.b16 %v346, %v345
    %vm363 = vcmask 64512
    %v365 = vsel %vm363, %v347, 0
    %v368 = vsel %vm363, %v348, 0
    %v371 = vsel %vm363, %v349, 0
    %v374 = vsel %vm363, %v350, 0
    %v377 = vsel %vm363, %v351, 0
    %v380 = vsel %vm363, %v352, 0
    %v383 = vsel %vm363, %v353, 0
    %v386 = vsel %vm363, %v354, 0
    %v389 = vsel %vm363, %v355, 0
    %v392 = vsel %vm363, %v356, 0
    %v395 = vsel %vm363, %v357, 0
    %v398 = vsel %vm363, %v358, 0
    %v401 = vsel %vm363, %v359, 0
    %v404 = vsel %vm363, %v360, 0
    %v407 = vsel %vm363, %v361, 0
    %v410 = vsel %vm363, %v362, 0
    %vm412 = vcmask 1043456
    %v414 = vsel %vm412, %v122, 0
    %416 = vmatprep.subr.bf16.mxu0 0
    %417 = vmatpush1.bf16.msra.mxu0 %v414
    %418 = vmatprep.subr.bf16.mxu0 0
    %419 = vmatpush1.bf16.msra.mxu0 0
    %420 = vmatprep.subr.bf16.mxu0 0
    %421 = vmatpush1.bf16.msra.mxu0 0
    %422 = vmatprep.subr.bf16.mxu0 0
    %423 = vmatpush1.bf16.msra.mxu0 0
    %424 = vmatprep.subr.bf16.mxu0 0
    %425 = vmatpush1.bf16.msra.mxu0 0
    %426 = vmatprep.subr.bf16.mxu0 0
    %427 = vmatpush1.bf16.msra.mxu0 0
    %428 = vmatprep.subr.bf16.mxu0 0
    %429 = vmatpush1.bf16.msra.mxu0 0
    %430 = vmatprep.subr.bf16.mxu0 0
    %431 = vmatpush1.bf16.msra.mxu0 0
    %432 = vmatprep.subr.bf16.mxu0 0
    %433 = vmatpush1.bf16.msra.mxu0 0
    %434 = vmatprep.subr.bf16.mxu0 0
    %435 = vmatpush1.bf16.msra.mxu0 0
    %436 = vmatprep.subr.bf16.mxu0 0
    %437 = vmatpush1.bf16.msra.mxu0 0
    %438 = vmatprep.subr.bf16.mxu0 0
    %439 = vmatpush1.bf16.msra.mxu0 0
    %440 = vmatprep.subr.bf16.mxu0 0
    %441 = vmatpush1.bf16.msra.mxu0 0
    %442 = vmatprep.subr.bf16.mxu0 0
    %443 = vmatpush1.bf16.msra.mxu0 0
    %444 = vmatprep.subr.bf16.mxu0 0
    %445 = vmatpush1.bf16.msra.mxu0 0
    %446 = vmatprep.subr.bf16.mxu0 0
    %447 = vmatpush1.bf16.msra.mxu0 0
    %448 = vmatprep.mubr.bf16.mxu0 0
    %449 = vmatmul.mubr.bf16.gmra.mrb[0].mxu0 %v365
    %v450 = vpop.f32.mrb[0].mxu0
    %v451 = vadd.f32 %v126, %v450
    %v452 = vpop.f32.mrb[0].mxu0
    %v453 = vpop.f32.mrb[0].mxu0
    %v454 = vadd.f32 %v131, %v453
    %v455 = vpop.f32.mrb[0].mxu0
    %456 = vmatprep.mubr.bf16.mxu0 0
    %457 = vmatmul.mubr.bf16.gmra.mrb[0].mxu0 %v368
    %v458 = vpop.f32.mrb[0].mxu0
    %v459 = vadd.f32 %v136, %v458
    %v460 = vpop.f32.mrb[0].mxu0
    %v461 = vpop.f32.mrb[0].mxu0
    %v462 = vadd.f32 %v141, %v461
    %v463 = vpop.f32.mrb[0].mxu0
    %464 = vmatprep.mubr.bf16.mxu0 0
    %465 = vmatmul.mubr.bf16.gmra.mrb[0].mxu0 %v371
    %v466 = vpop.f32.mrb[0].mxu0
    %v467 = vadd.f32 %v146, %v466
    %v468 = vpop.f32.mrb[0].mxu0
    %v469 = vpop.f32.mrb[0].mxu0
    %v470 = vadd.f32 %v151, %v469
    %v471 = vpop.f32.mrb[0].mxu0
    %472 = vmatprep.mubr.bf16.mxu0 0
    %473 = vmatmul.mubr.bf16.gmra.mrb[0].mxu0 %v374
    %v474 = vpop.f32.mrb[0].mxu0
    %v475 = vadd.f32 %v156, %v474
    %v476 = vpop.f32.mrb[0].mxu0
    %v477 = vpop.f32.mrb[0].mxu0
    %v478 = vadd.f32 %v161, %v477
    %v479 = vpop.f32.mrb[0].mxu0
    %480 = vmatprep.mubr.bf16.mxu0 0
    %481 = vmatmul.mubr.bf16.gmra.mrb[0].mxu0 %v377
    %v482 = vpop.f32.mrb[0].mxu0
    %v483 = vadd.f32 %v166, %v482
    %v484 = vpop.f32.mrb[0].mxu0
    %v485 = vpop.f32.mrb[0].mxu0
    %v486 = vadd.f32 %v171, %v485
    %v487 = vpop.f32.mrb[0].mxu0
    %488 = vmatprep.mubr.bf16.mxu0 0
    %489 = vmatmul.mubr.bf16.gmra.mrb[0].mxu0 %v380
    %v490 = vpop.f32.mrb[0].mxu0
    %v491 = vadd.f32 %v176, %v490
    %v492 = vpop.f32.mrb[0].mxu0
    %v493 = vpop.f32.mrb[0].mxu0
    %v494 = vadd.f32 %v181, %v493
    %v495 = vpop.f32.mrb[0].mxu0
    %496 = vmatprep.mubr.bf16.mxu0 0
    %497 = vmatmul.mubr.bf16.gmra.mrb[0].mxu0 %v383
    %v498 = vpop.f32.mrb[0].mxu0
    %v499 = vadd.f32 %v186, %v498
    %v500 = vpop.f32.mrb[0].mxu0
    %v501 = vpop.f32.mrb[0].mxu0
    %v502 = vadd.f32 %v191, %v501
    %v503 = vpop.f32.mrb[0].mxu0
    %504 = vmatprep.mubr.bf16.mxu0 0
    %505 = vmatmul.mubr.bf16.gmra.mrb[0].mxu0 %v386
    %v506 = vpop.f32.mrb[0].mxu0
    %v507 = vadd.f32 %v196, %v506
    %v508 = vpop.f32.mrb[0].mxu0
    %v509 = vpop.f32.mrb[0].mxu0
    %v510 = vadd.f32 %v201, %v509
    %v511 = vpop.f32.mrb[0].mxu0
    %512 = vmatprep.mubr.bf16.mxu0 0
    %513 = vmatmul.mubr.bf16.gmra.mrb[0].mxu0 %v389
    %v514 = vpop.f32.mrb[0].mxu0
    %v515 = vadd.f32 %v206, %v514
    %v516 = vpop.f32.mrb[0].mxu0
    %v517 = vpop.f32.mrb[0].mxu0
    %v518 = vadd.f32 %v211, %v517
    %v519 = vpop.f32.mrb[0].mxu0
    %520 = vmatprep.mubr.bf16.mxu0 0
    %521 = vmatmul.mubr.bf16.gmra.mrb[0].mxu0 %v392
    %v522 = vpop.f32.mrb[0].mxu0
    %v523 = vadd.f32 %v216, %v522
    %v524 = vpop.f32.mrb[0].mxu0
    %v525 = vpop.f32.mrb[0].mxu0
    %v526 = vadd.f32 %v221, %v525
    %v527 = vpop.f32.mrb[0].mxu0
    %528 = vmatprep.mubr.bf16.mxu0 0
    %529 = vmatmul.mubr.bf16.gmra.mrb[0].mxu0 %v395
    %v530 = vpop.f32.mrb[0].mxu0
    %v531 = vadd.f32 %v226, %v530
    %v532 = vpop.f32.mrb[0].mxu0
    %v533 = vpop.f32.mrb[0].mxu0
    %v534 = vadd.f32 %v231, %v533
    %v535 = vpop.f32.mrb[0].mxu0
    %536 = vmatprep.mubr.bf16.mxu0 0
    %537 = vmatmul.mubr.bf16.gmra.mrb[0].mxu0 %v398
    %v538 = vpop.f32.mrb[0].mxu0
    %v539 = vadd.f32 %v236, %v538
    %v540 = vpop.f32.mrb[0].mxu0
    %v541 = vpop.f32.mrb[0].mxu0
    %v542 = vadd.f32 %v241, %v541
    %v543 = vpop.f32.mrb[0].mxu0
    %544 = vmatprep.mubr.bf16.mxu0 0
    %545 = vmatmul.mubr.bf16.gmra.mrb[0].mxu0 %v401
    %v546 = vpop.f32.mrb[0].mxu0
    %v547 = vadd.f32 %v246, %v546
    %v548 = vpop.f32.mrb[0].mxu0
    %v549 = vpop.f32.mrb[0].mxu0
    %v550 = vadd.f32 %v251, %v549
    %v551 = vpop.f32.mrb[0].mxu0
    %552 = vmatprep.mubr.bf16.mxu0 0
    %553 = vmatmul.mubr.bf16.gmra.mrb[0].mxu0 %v404
    %v554 = vpop.f32.mrb[0].mxu0
    %v555 = vadd.f32 %v256, %v554
    %v556 = vpop.f32.mrb[0].mxu0
    %v557 = vpop.f32.mrb[0].mxu0
    %v558 = vadd.f32 %v261, %v557
    %v559 = vpop.f32.mrb[0].mxu0
    %560 = vmatprep.mubr.bf16.mxu0 0
    %561 = vmatmul.mubr.bf16.gmra.mrb[0].mxu0 %v407
    %v562 = vpop.f32.mrb[0].mxu0
    %v563 = vadd.f32 %v266, %v562
    %v564 = vpop.f32.mrb[0].mxu0
    %v565 = vpop.f32.mrb[0].mxu0
    %v566 = vadd.f32 %v271, %v565
    %v567 = vpop.f32.mrb[0].mxu0
    %568 = vmatprep.mubr.bf16.mxu0 0
    %569 = vmatmul.mubr.bf16.gmra.mrb[0].mxu0 %v410
    %v570 = vpop.f32.mrb[0].mxu0
    %v571 = vadd.f32 %v276, %v570
    %v572 = vpop.f32.mrb[0].mxu0
    %v573 = vpop.f32.mrb[0].mxu0
    %v574 = vadd.f32 %v281, %v573
    %v575 = vpop.f32.mrb[0].mxu0
    %576 = vdwg.mxu0
    %v577 = vmax.f32 %v451, 0.0
    %v578 = vmax.f32 %v454, 0.0
    %v579 = vmax.f32 %v459, 0.0
    %v580 = vmax.f32 %v462, 0.0
    %v581 = vmax.f32 %v467, 0.0
    %v582 = vmax.f32 %v470, 0.0
    %v583 = vmax.f32 %v475, 0.0
    %v584 = vmax.f32 %v478, 0.0
    %v585 = vmax.f32 %v483, 0.0
    %v586 = vmax.f32 %v486, 0.0
    %v587 = vmax.f32 %v491, 0.0
    %v588 = vmax.f32 %v494, 0.0
    %v589 = vmax.f32 %v499, 0.0
    %v590 = vmax.f32 %v502, 0.0
    %v591 = vmax.f32 %v507, 0.0
    %v592 = vmax.f32 %v510, 0.0
    %v593 = vmax.f32 %v515, 0.0
    %v594 = vmax.f32 %v518, 0.0
    %v595 = vmax.f32 %v523, 0.0
    %v596 = vmax.f32 %v526, 0.0
    %v597 = vmax.f32 %v531, 0.0
    %v598 = vmax.f32 %v534, 0.0
    %v599 = vmax.f32 %v539, 0.0
    %v600 = vmax.f32 %v542, 0.0
    %v601 = vmax.f32 %v547, 0.0
    %v602 = vmax.f32 %v550, 0.0
    %v603 = vmax.f32 %v555, 0.0
    %v604 = vmax.f32 %v558, 0.0
    %v605 = vmax.f32 %v563, 0.0
    %v606 = vmax.f32 %v566, 0.0
    %v607 = vmax.f32 %v571, 0.0
    %v608 = vmax.f32 %v574, 0.0
    %v609 = vld [vmem:[%s2] sm:$0xff]
    %v610 = vld [vmem:[%s2 + $0x8] sm:$0xff]
    %v611 = vld [vmem:[%s2 + $0x10] sm:$0xff]
    %v612 = vld [vmem:[%s2 + $0x18] sm:$0xff]
    %v613 = vld [vmem:[%s2 + $0x20] sm:$0xff]
    %v614 = vld [vmem:[%s2 + $0x28] sm:$0xff]
    %v615 = vld [vmem:[%s2 + $0x30] sm:$0xff]
    %v616 = vld [vmem:[%s2 + $0x38] sm:$0xff]
    %v617 = vld [vmem:[%s2 + $0x40] sm:$0xff]
    %v618 = vld [vmem:[%s2 + $0x48] sm:$0xff]
    %v619 = vld [vmem:[%s2 + $0x50] sm:$0xff]
    %v620 = vld [vmem:[%s2 + $0x58] sm:$0xff]
    %v621 = vld [vmem:[%s2 + $0x60] sm:$0xff]
    %v622 = vld [vmem:[%s2 + $0x68] sm:$0xff]
    %v623 = vld [vmem:[%s2 + $0x70] sm:$0xff]
    %v624 = vld [vmem:[%s2 + $0x78] sm:$0xff]
    %v625 = vld [vmem:[%s2 + $0x80] sm:$0xff]
    %v626 = vld [vmem:[%s2 + $0x88] sm:$0xff]
    %v627 = vld [vmem:[%s2 + $0x90] sm:$0xff]
    %v628 = vld [vmem:[%s2 + $0x98] sm:$0xff]
    %v629 = vld [vmem:[%s2 + $0xa0] sm:$0xff]
    %v630 = vld [vmem:[%s2 + $0xa8] sm:$0xff]
    %v631 = vld [vmem:[%s2 + $0xb0] sm:$0xff]
    %v632 = vld [vmem:[%s2 + $0xb8] sm:$0xff]
    %v633 = vld [vmem:[%s2 + $0xc0] sm:$0xff]
    %v634 = vld [vmem:[%s2 + $0xc8] sm:$0xff]
    %v635 = vld [vmem:[%s2 + $0xd0] sm:$0xff]
    %v636 = vld [vmem:[%s2 + $0xd8] sm:$0xff]
    %v637 = vld [vmem:[%s2 + $0xe0] sm:$0xff]
    %v638 = vld [vmem:[%s2 + $0xe8] sm:$0xff]
    %v639 = vld [vmem:[%s2 + $0xf0] sm:$0xff]
    %v640 = vld [vmem:[%s2 + $0xf8] sm:$0xff]
    %v641 = vpack.c.bf16 %v578, %v577
    %v642 = vpack.c.bf16 %v580, %v579
    %v643 = vpack.c.bf16 %v582, %v581
    %v644 = vpack.c.bf16 %v584, %v583
    %v645 = vpack.c.bf16 %v586, %v585
    %v646 = vpack.c.bf16 %v588, %v587
    %v647 = vpack.c.bf16 %v590, %v589
    %v648 = vpack.c.bf16 %v592, %v591
    %v649 = vpack.c.bf16 %v594, %v593
    %v650 = vpack.c.bf16 %v596, %v595
    %v651 = vpack.c.bf16 %v598, %v597
    %v652 = vpack.c.bf16 %v600, %v599
    %v653 = vpack.c.bf16 %v602, %v601
    %v654 = vpack.c.bf16 %v604, %v603
    %v655 = vpack.c.bf16 %v606, %v605
    %v656 = vpack.c.bf16 %v608, %v607
    %658 = vset.pattern.permute.xlu0 0
    %659 = vperm.xlu0 %658, %v57
    %v660 = vpop.permute.xlu0 %659
    %663 = vset.pattern.permute.xlu0 0
    %664 = vperm.xlu0 %663, %v58
    %v665 = vpop.permute.xlu0 %664
    %668 = vset.pattern.permute.xlu0 0
    %669 = vperm.xlu0 %668, %v59
    %v670 = vpop.permute.xlu0 %669
    %673 = vset.pattern.permute.xlu0 0
    %674 = vperm.xlu0 %673, %v60
    %v675 = vpop.permute.xlu0 %674
    %678 = vset.pattern.permute.xlu0 0
    %679 = vperm.xlu0 %678, %v61
    %v680 = vpop.permute.xlu0 %679
    %683 = vset.pattern.permute.xlu0 0
    %684 = vperm.xlu0 %683, %v62
    %v685 = vpop.permute.xlu0 %684
    %688 = vset.pattern.permute.xlu0 0
    %689 = vperm.xlu0 %688, %v63
    %v690 = vpop.permute.xlu0 %689
    %693 = vset.pattern.permute.xlu0 0
    %694 = vperm.xlu0 %693, %v64
    %v695 = vpop.permute.xlu0 %694
    %698 = vset.pattern.permute.xlu0 0
    %699 = vperm.xlu0 %698, %v65
    %v700 = vpop.permute.xlu0 %699
    %703 = vset.pattern.permute.xlu0 0
    %704 = vperm.xlu0 %703, %v66
    %v705 = vpop.permute.xlu0 %704
    %708 = vset.pattern.permute.xlu0 0
    %709 = vperm.xlu0 %708, %v67
    %v710 = vpop.permute.xlu0 %709
    %713 = vset.pattern.permute.xlu0 0
    %714 = vperm.xlu0 %713, %v68
    %v715 = vpop.permute.xlu0 %714
    %718 = vset.pattern.permute.xlu0 0
    %719 = vperm.xlu0 %718, %v69
    %v720 = vpop.permute.xlu0 %719
    %723 = vset.pattern.permute.xlu0 0
    %724 = vperm.xlu0 %723, %v70
    %v725 = vpop.permute.xlu0 %724
    %728 = vset.pattern.permute.xlu0 0
    %729 = vperm.xlu0 %728, %v71
    %v730 = vpop.permute.xlu0 %729
    %733 = vset.pattern.permute.xlu0 0
    %734 = vperm.xlu0 %733, %v72
    %v735 = vpop.permute.xlu0 %734
    %738 = vset.pattern.permute.xlu0 0
    %739 = vperm.xlu0 %738, %v73
    %v740 = vpop.permute.xlu0 %739
    %743 = vset.pattern.permute.xlu0 0
    %744 = vperm.xlu0 %743, %v74
    %v745 = vpop.permute.xlu0 %744
    %748 = vset.pattern.permute.xlu0 0
    %749 = vperm.xlu0 %748, %v75
    %v750 = vpop.permute.xlu0 %749
    %753 = vset.pattern.permute.xlu0 0
    %754 = vperm.xlu0 %753, %v76
    %v755 = vpop.permute.xlu0 %754
    %758 = vset.pattern.permute.xlu0 0
    %759 = vperm.xlu0 %758, %v77
    %v760 = vpop.permute.xlu0 %759
    %763 = vset.pattern.permute.xlu0 0
    %764 = vperm.xlu0 %763, %v78
    %v765 = vpop.permute.xlu0 %764
    %768 = vset.pattern.permute.xlu0 0
    %769 = vperm.xlu0 %768, %v79
    %v770 = vpop.permute.xlu0 %769
    %773 = vset.pattern.permute.xlu0 0
    %774 = vperm.xlu0 %773, %v80
    %v775 = vpop.permute.xlu0 %774
    %778 = vset.pattern.permute.xlu0 0
    %779 = vperm.xlu0 %778, %v81
    %v780 = vpop.permute.xlu0 %779
    %783 = vset.pattern.permute.xlu0 0
    %784 = vperm.xlu0 %783, %v82
    %v785 = vpop.permute.xlu0 %784
    %788 = vset.pattern.permute.xlu0 0
    %789 = vperm.xlu0 %788, %v83
    %v790 = vpop.permute.xlu0 %789
    %793 = vset.pattern.permute.xlu0 0
    %794 = vperm.xlu0 %793, %v84
    %v795 = vpop.permute.xlu0 %794
    %798 = vset.pattern.permute.xlu0 0
    %799 = vperm.xlu0 %798, %v85
    %v800 = vpop.permute.xlu0 %799
    %803 = vset.pattern.permute.xlu0 0
    %804 = vperm.xlu0 %803, %v86
    %v805 = vpop.permute.xlu0 %804
    %808 = vset.pattern.permute.xlu0 0
    %809 = vperm.xlu0 %808, %v87
    %v810 = vpop.permute.xlu0 %809
    %813 = vset.pattern.permute.xlu0 0
    %814 = vperm.xlu0 %813, %v88
    %v815 = vpop.permute.xlu0 %814
    %v849 = vunpack.c.l.b16 %v609
    %v850 = vunpack.c.h.b16 %v609
    %v851 = vunpack.c.l.b16 %v610
    %v852 = vunpack.c.h.b16 %v610
    %v853 = vunpack.c.l.b16 %v611
    %v854 = vunpack.c.h.b16 %v611
    %v855 = vunpack.c.l.b16 %v612
    %v856 = vunpack.c.h.b16 %v612
    %v857 = vunpack.c.l.b16 %v613
    %v858 = vunpack.c.h.b16 %v613
    %v859 = vunpack.c.l.b16 %v614
    %v860 = vunpack.c.h.b16 %v614
    %v861 = vunpack.c.l.b16 %v615
    %v862 = vunpack.c.h.b16 %v615
    %v863 = vunpack.c.l.b16 %v616
    %v864 = vunpack.c.h.b16 %v616
    %v865 = vunpack.c.l.b16 %v617
    %v866 = vunpack.c.h.b16 %v617
    %v867 = vunpack.c.l.b16 %v618
    %v868 = vunpack.c.h.b16 %v618
    %v869 = vunpack.c.l.b16 %v619
    %v870 = vunpack.c.h.b16 %v619
    %v871 = vunpack.c.l.b16 %v620
    %v872 = vunpack.c.h.b16 %v620
    %v873 = vunpack.c.l.b16 %v621
    %v874 = vunpack.c.h.b16 %v621
    %v875 = vunpack.c.l.b16 %v622
    %v876 = vunpack.c.h.b16 %v622
    %v877 = vunpack.c.l.b16 %v623
    %v878 = vunpack.c.h.b16 %v623
    %v879 = vunpack.c.l.b16 %v624
    %v880 = vunpack.c.h.b16 %v624
    %v881 = vunpack.c.l.b16 %v625
    %v882 = vunpack.c.h.b16 %v625
    %v883 = vunpack.c.l.b16 %v626
    %v884 = vunpack.c.h.b16 %v626
    %v885 = vunpack.c.l.b16 %v627
    %v886 = vunpack.c.h.b16 %v627
    %v887 = vunpack.c.l.b16 %v628
    %v888 = vunpack.c.h.b16 %v628
    %v889 = vunpack.c.l.b16 %v629
    %v890 = vunpack.c.h.b16 %v629
    %v891 = vunpack.c.l.b16 %v630
    %v892 = vunpack.c.h.b16 %v630
    %v893 = vunpack.c.l.b16 %v631
    %v894 = vunpack.c.h.b16 %v631
    %v895 = vunpack.c.l.b16 %v632
    %v896 = vunpack.c.h.b16 %v632
    %v897 = vunpack.c.l.b16 %v633
    %v898 = vunpack.c.h.b16 %v633
    %v899 = vunpack.c.l.b16 %v634
    %v900 = vunpack.c.h.b16 %v634
    %v901 = vunpack.c.l.b16 %v635
    %v902 = vunpack.c.h.b16 %v635
    %v903 = vunpack.c.l.b16 %v636
    %v904 = vunpack.c.h.b16 %v636
    %v905 = vunpack.c.l.b16 %v637
    %v906 = vunpack.c.h.b16 %v637
    %v907 = vunpack.c.l.b16 %v638
    %v908 = vunpack.c.h.b16 %v638
    %v909 = vunpack.c.l.b16 %v639
    %v910 = vunpack.c.h.b16 %v639
    %v911 = vunpack.c.l.b16 %v640
    %v912 = vunpack.c.h.b16 %v640
    %v913 = vpack.c.b16 %v851, %v849
    %v914 = vpack.c.b16 %v852, %v850
    %v915 = vpack.c.b16 %v855, %v853
    %v916 = vpack.c.b16 %v856, %v854
    %v917 = vpack.c.b16 %v859, %v857
    %v918 = vpack.c.b16 %v860, %v858
    %v919 = vpack.c.b16 %v863, %v861
    %v920 = vpack.c.b16 %v864, %v862
    %v921 = vpack.c.b16 %v867, %v865
    %v922 = vpack.c.b16 %v868, %v866
    %v923 = vpack.c.b16 %v871, %v869
    %v924 = vpack.c.b16 %v872, %v870
    %v925 = vpack.c.b16 %v875, %v873
    %v926 = vpack.c.b16 %v876, %v874
    %v927 = vpack.c.b16 %v879, %v877
    %v928 = vpack.c.b16 %v880, %v878
    %v929 = vpack.c.b16 %v883, %v881
    %v930 = vpack.c.b16 %v884, %v882
    %v931 = vpack.c.b16 %v887, %v885
    %v932 = vpack.c.b16 %v888, %v886
    %v933 = vpack.c.b16 %v891, %v889
    %v934 = vpack.c.b16 %v892, %v890
    %v935 = vpack.c.b16 %v895, %v893
    %v936 = vpack.c.b16 %v896, %v894
    %v937 = vpack.c.b16 %v899, %v897
    %v938 = vpack.c.b16 %v900, %v898
    %v939 = vpack.c.b16 %v903, %v901
    %v940 = vpack.c.b16 %v904, %v902
    %v941 = vpack.c.b16 %v907, %v905
    %v942 = vpack.c.b16 %v908, %v906
    %v943 = vpack.c.b16 %v911, %v909
    %v944 = vpack.c.b16 %v912, %v910
    %977 = vmatprep.subr.bf16.mxu0 0
    %978 = vmatpush1.bf16.msra.mxu0 %v641
    %979 = vmatprep.subr.bf16.mxu0 0
    %980 = vmatpush1.bf16.msra.mxu0 %v642
    %981 = vmatprep.subr.bf16.mxu0 0
    %982 = vmatpush1.bf16.msra.mxu0 %v643
    %983 = vmatprep.subr.bf16.mxu0 0
    %984 = vmatpush1.bf16.msra.mxu0 %v644
    %985 = vmatprep.subr.bf16.mxu0 0
    %986 = vmatpush1.bf16.msra.mxu0 %v645
    %987 = vmatprep.subr.bf16.mxu0 0
    %988 = vmatpush1.bf16.msra.mxu0 %v646
    %989 = vmatprep.subr.bf16.mxu0 0
    %990 = vmatpush1.bf16.msra.mxu0 %v647
    %991 = vmatprep.subr.bf16.mxu0 0
    %992 = vmatpush1.bf16.msra.mxu0 %v648
    %993 = vmatprep.subr.bf16.mxu0 0
    %994 = vmatpush1.bf16.msra.mxu0 %v649
    %995 = vmatprep.subr.bf16.mxu0 0
    %996 = vmatpush1.bf16.msra.mxu0 %v650
    %997 = vmatprep.subr.bf16.mxu0 0
    %998 = vmatpush1.bf16.msra.mxu0 %v651
    %999 = vmatprep.subr.bf16.mxu0 0
    %1000 = vmatpush1.bf16.msra.mxu0 %v652
    %1001 = vmatprep.subr.bf16.mxu0 0
    %1002 = vmatpush1.bf16.msra.mxu0 %v653
    %1003 = vmatprep.subr.bf16.mxu0 0
    %1004 = vmatpush1.bf16.msra.mxu0 %v654
    %1005 = vmatprep.subr.bf16.mxu0 0
    %1006 = vmatpush1.bf16.msra.mxu0 %v655
    %1007 = vmatprep.subr.bf16.mxu0 0
    %1008 = vmatpush1.bf16.msra.mxu0 %v656
    %1009 = vmatprep.mubr.bf16.mxu0 %v914
    %1010 = vmatmul.mubr.bf16.gmra.mrb[0].mxu0 %v913
    %v1011 = vpop.f32.mrb[0].mxu0
    %v1012 = vadd.f32 %v660, %v1011
    %v1013 = vpop.f32.mrb[0].mxu0
    %v1014 = vpop.f32.mrb[0].mxu0
    %v1015 = vadd.f32 %v665, %v1014
    %v1016 = vpop.f32.mrb[0].mxu0
    %1017 = vmatprep.mubr.bf16.mxu0 %v916
    %1018 = vmatmul.mubr.bf16.gmra.mrb[0].mxu0 %v915
    %v1019 = vpop.f32.mrb[0].mxu0
    %v1020 = vadd.f32 %v670, %v1019
    %v1021 = vpop.f32.mrb[0].mxu0
    %v1022 = vpop.f32.mrb[0].mxu0
    %v1023 = vadd.f32 %v675, %v1022
    %v1024 = vpop.f32.mrb[0].mxu0
    %1025 = vmatprep.mubr.bf16.mxu0 %v918
    %1026 = vmatmul.mubr.bf16.gmra.mrb[0].mxu0 %v917
    %v1027 = vpop.f32.mrb[0].mxu0
    %v1028 = vadd.f32 %v680, %v1027
    %v1029 = vpop.f32.mrb[0].mxu0
    %v1030 = vpop.f32.mrb[0].mxu0
    %v1031 = vadd.f32 %v685, %v1030
    %v1032 = vpop.f32.mrb[0].mxu0
    %1033 = vmatprep.mubr.bf16.mxu0 %v920
    %1034 = vmatmul.mubr.bf16.gmra.mrb[0].mxu0 %v919
    %v1035 = vpop.f32.mrb[0].mxu0
    %v1036 = vadd.f32 %v690, %v1035
    %v1037 = vpop.f32.mrb[0].mxu0
    %v1038 = vpop.f32.mrb[0].mxu0
    %v1039 = vadd.f32 %v695, %v1038
    %v1040 = vpop.f32.mrb[0].mxu0
    %1041 = vmatprep.mubr.bf16.mxu0 %v922
    %1042 = vmatmul.mubr.bf16.gmra.mrb[0].mxu0 %v921
    %v1043 = vpop.f32.mrb[0].mxu0
    %v1044 = vadd.f32 %v700, %v1043
    %v1045 = vpop.f32.mrb[0].mxu0
    %v1046 = vpop.f32.mrb[0].mxu0
    %v1047 = vadd.f32 %v705, %v1046
    %v1048 = vpop.f32.mrb[0].mxu0
    %1049 = vmatprep.mubr.bf16.mxu0 %v924
    %1050 = vmatmul.mubr.bf16.gmra.mrb[0].mxu0 %v923
    %v1051 = vpop.f32.mrb[0].mxu0
    %v1052 = vadd.f32 %v710, %v1051
    %v1053 = vpop.f32.mrb[0].mxu0
    %v1054 = vpop.f32.mrb[0].mxu0
    %v1055 = vadd.f32 %v715, %v1054
    %v1056 = vpop.f32.mrb[0].mxu0
    %1057 = vmatprep.mubr.bf16.mxu0 %v926
    %1058 = vmatmul.mubr.bf16.gmra.mrb[0].mxu0 %v925
    %v1059 = vpop.f32.mrb[0].mxu0
    %v1060 = vadd.f32 %v720, %v1059
    %v1061 = vpop.f32.mrb[0].mxu0
    %v1062 = vpop.f32.mrb[0].mxu0
    %v1063 = vadd.f32 %v725, %v1062
    %v1064 = vpop.f32.mrb[0].mxu0
    %1065 = vmatprep.mubr.bf16.mxu0 %v928
    %1066 = vmatmul.mubr.bf16.gmra.mrb[0].mxu0 %v927
    %v1067 = vpop.f32.mrb[0].mxu0
    %v1068 = vadd.f32 %v730, %v1067
    %v1069 = vpop.f32.mrb[0].mxu0
    %v1070 = vpop.f32.mrb[0].mxu0
    %v1071 = vadd.f32 %v735, %v1070
    %v1072 = vpop.f32.mrb[0].mxu0
    %1073 = vmatprep.mubr.bf16.mxu0 %v930
    %1074 = vmatmul.mubr.bf16.gmra.mrb[0].mxu0 %v929
    %v1075 = vpop.f32.mrb[0].mxu0
    %v1076 = vadd.f32 %v740, %v1075
    %v1077 = vpop.f32.mrb[0].mxu0
    %v1078 = vpop.f32.mrb[0].mxu0
    %v1079 = vadd.f32 %v745, %v1078
    %v1080 = vpop.f32.mrb[0].mxu0
    %1081 = vmatprep.mubr.bf16.mxu0 %v932
    %1082 = vmatmul.mubr.bf16.gmra.mrb[0].mxu0 %v931
    %v1083 = vpop.f32.mrb[0].mxu0
    %v1084 = vadd.f32 %v750, %v1083
    %v1085 = vpop.f32.mrb[0].mxu0
    %v1086 = vpop.f32.mrb[0].mxu0
    %v1087 = vadd.f32 %v755, %v1086
    %v1088 = vpop.f32.mrb[0].mxu0
    %1089 = vmatprep.mubr.bf16.mxu0 %v934
    %1090 = vmatmul.mubr.bf16.gmra.mrb[0].mxu0 %v933
    %v1091 = vpop.f32.mrb[0].mxu0
    %v1092 = vadd.f32 %v760, %v1091
    %v1093 = vpop.f32.mrb[0].mxu0
    %v1094 = vpop.f32.mrb[0].mxu0
    %v1095 = vadd.f32 %v765, %v1094
    %v1096 = vpop.f32.mrb[0].mxu0
    %1097 = vmatprep.mubr.bf16.mxu0 %v936
    %1098 = vmatmul.mubr.bf16.gmra.mrb[0].mxu0 %v935
    %v1099 = vpop.f32.mrb[0].mxu0
    %v1100 = vadd.f32 %v770, %v1099
    %v1101 = vpop.f32.mrb[0].mxu0
    %v1102 = vpop.f32.mrb[0].mxu0
    %v1103 = vadd.f32 %v775, %v1102
    %v1104 = vpop.f32.mrb[0].mxu0
    %1105 = vmatprep.mubr.bf16.mxu0 %v938
    %1106 = vmatmul.mubr.bf16.gmra.mrb[0].mxu0 %v937
    %v1107 = vpop.f32.mrb[0].mxu0
    %v1108 = vadd.f32 %v780, %v1107
    %v1109 = vpop.f32.mrb[0].mxu0
    %v1110 = vpop.f32.mrb[0].mxu0
    %v1111 = vadd.f32 %v785, %v1110
    %v1112 = vpop.f32.mrb[0].mxu0
    %1113 = vmatprep.mubr.bf16.mxu0 %v940
    %1114 = vmatmul.mubr.bf16.gmra.mrb[0].mxu0 %v939
    %v1115 = vpop.f32.mrb[0].mxu0
    %v1116 = vadd.f32 %v790, %v1115
    %v1117 = vpop.f32.mrb[0].mxu0
    %v1118 = vpop.f32.mrb[0].mxu0
    %v1119 = vadd.f32 %v795, %v1118
    %v1120 = vpop.f32.mrb[0].mxu0
    %1121 = vmatprep.mubr.bf16.mxu0 %v942
    %1122 = vmatmul.mubr.bf16.gmra.mrb[0].mxu0 %v941
    %v1123 = vpop.f32.mrb[0].mxu0
    %v1124 = vadd.f32 %v800, %v1123
    %v1125 = vpop.f32.mrb[0].mxu0
    %v1126 = vpop.f32.mrb[0].mxu0
    %v1127 = vadd.f32 %v805, %v1126
    %v1128 = vpop.f32.mrb[0].mxu0
    %1129 = vmatprep.mubr.bf16.mxu0 %v944
    %1130 = vmatmul.mubr.bf16.gmra.mrb[0].mxu0 %v943
    %v1131 = vpop.f32.mrb[0].mxu0
    %v1132 = vadd.f32 %v810, %v1131
    %v1133 = vpop.f32.mrb[0].mxu0
    %v1134 = vpop.f32.mrb[0].mxu0
    %v1135 = vadd.f32 %v815, %v1134
    %v1136 = vpop.f32.mrb[0].mxu0
    %1137 = vdwg.mxu0
    %v1138 = vmax.f32 %v1012, 0.0
    %v1139 = vmax.f32 %v1015, 0.0
    %v1140 = vmax.f32 %v1020, 0.0
    %v1141 = vmax.f32 %v1023, 0.0
    %v1142 = vmax.f32 %v1028, 0.0
    %v1143 = vmax.f32 %v1031, 0.0
    %v1144 = vmax.f32 %v1036, 0.0
    %v1145 = vmax.f32 %v1039, 0.0
    %v1146 = vmax.f32 %v1044, 0.0
    %v1147 = vmax.f32 %v1047, 0.0
    %v1148 = vmax.f32 %v1052, 0.0
    %v1149 = vmax.f32 %v1055, 0.0
    %v1150 = vmax.f32 %v1060, 0.0
    %v1151 = vmax.f32 %v1063, 0.0
    %v1152 = vmax.f32 %v1068, 0.0
    %v1153 = vmax.f32 %v1071, 0.0
    %v1154 = vmax.f32 %v1076, 0.0
    %v1155 = vmax.f32 %v1079, 0.0
    %v1156 = vmax.f32 %v1084, 0.0
    %v1157 = vmax.f32 %v1087, 0.0
    %v1158 = vmax.f32 %v1092, 0.0
    %v1159 = vmax.f32 %v1095, 0.0
    %v1160 = vmax.f32 %v1100, 0.0
    %v1161 = vmax.f32 %v1103, 0.0
    %v1162 = vmax.f32 %v1108, 0.0
    %v1163 = vmax.f32 %v1111, 0.0
    %v1164 = vmax.f32 %v1116, 0.0
    %v1165 = vmax.f32 %v1119, 0.0
    %v1166 = vmax.f32 %v1124, 0.0
    %v1167 = vmax.f32 %v1127, 0.0
    %v1168 = vmax.f32 %v1132, 0.0
    %v1169 = vmax.f32 %v1135, 0.0
    %v1170 = vld [vmem:[%s3] sm:$0x3]
    %v1171 = vpack.c.bf16 %v1139, %v1138
    %v1172 = vpack.c.bf16 %v1141, %v1140
    %v1173 = vpack.c.bf16 %v1143, %v1142
    %v1174 = vpack.c.bf16 %v1145, %v1144
    %v1175 = vpack.c.bf16 %v1147, %v1146
    %v1176 = vpack.c.bf16 %v1149, %v1148
    %v1177 = vpack.c.bf16 %v1151, %v1150
    %v1178 = vpack.c.bf16 %v1153, %v1152
    %v1179 = vpack.c.bf16 %v1155, %v1154
    %v1180 = vpack.c.bf16 %v1157, %v1156
    %v1181 = vpack.c.bf16 %v1159, %v1158
    %v1182 = vpack.c.bf16 %v1161, %v1160
    %v1183 = vpack.c.bf16 %v1163, %v1162
    %v1184 = vpack.c.bf16 %v1165, %v1164
    %v1185 = vpack.c.bf16 %v1167, %v1166
    %v1186 = vpack.c.bf16 %v1169, %v1168
    %v1187 = vld [vmem:[%s5] sm:$0x3]
    %1189 = vset.pattern.permute.xlu0 0
    %1190 = vperm.xlu0 %1189, %v1187
    %v1191 = vpop.permute.xlu0 %1190
    %v1195 = vunpack.c.l.s4 1966171168
    %v1196 = vunpack.c.0.s8 %v1195
    %v1197 = vlaneseq
    %v1198 = vshrl.u32 %v1197, 7
    %v1199 = vsub.s32 %v1196, %v1198
    %v1200 = vrot.slane %v1170, %v1199
    %v1201 = vcombine.high %v1200, %v1200
    %v1203 = vunpack.c.l.s4 1966171168
    %v1204 = vunpack.c.0.s8 %v1203
    %v1205 = vlaneseq
    %v1206 = vshrl.u32 %v1205, 7
    %v1207 = vsub.s32 %v1204, %v1206
    %v1208 = vrot.slane %v1200, %v1207
    %v1210 = vunpack.c.l.s4 1966171168
    %v1211 = vunpack.c.0.s8 %v1210
    %v1212 = vlaneseq
    %v1213 = vshrl.u32 %v1212, 7
    %v1214 = vsub.s32 %v1211, %v1213
    %v1215 = vrot.slane %v1201, %v1214
    %1218 = vmatprep.subr.bf16.mxu0 0
    %1219 = vmatpush1.bf16.msra.mxu0 %v1171
    %1220 = vmatprep.subr.bf16.mxu0 0
    %1221 = vmatpush1.bf16.msra.mxu0 %v1172
    %1222 = vmatprep.subr.bf16.mxu0 0
    %1223 = vmatpush1.bf16.msra.mxu0 %v1173
    %1224 = vmatprep.subr.bf16.mxu0 0
    %1225 = vmatpush1.bf16.msra.mxu0 %v1174
    %1226 = vmatprep.subr.bf16.mxu0 0
    %1227 = vmatpush1.bf16.msra.mxu0 %v1175
    %1228 = vmatprep.subr.bf16.mxu0 0
    %1229 = vmatpush1.bf16.msra.mxu0 %v1176
    %1230 = vmatprep.subr.bf16.mxu0 0
    %1231 = vmatpush1.bf16.msra.mxu0 %v1177
    %1232 = vmatprep.subr.bf16.mxu0 0
    %1233 = vmatpush1.bf16.msra.mxu0 %v1178
    %1234 = vmatprep.subr.bf16.mxu0 0
    %1235 = vmatpush1.bf16.msra.mxu0 %v1179
    %1236 = vmatprep.subr.bf16.mxu0 0
    %1237 = vmatpush1.bf16.msra.mxu0 %v1180
    %1238 = vmatprep.subr.bf16.mxu0 0
    %1239 = vmatpush1.bf16.msra.mxu0 %v1181
    %1240 = vmatprep.subr.bf16.mxu0 0
    %1241 = vmatpush1.bf16.msra.mxu0 %v1182
    %1242 = vmatprep.subr.bf16.mxu0 0
    %1243 = vmatpush1.bf16.msra.mxu0 %v1183
    %1244 = vmatprep.subr.bf16.mxu0 0
    %1245 = vmatpush1.bf16.msra.mxu0 %v1184
    %1246 = vmatprep.subr.bf16.mxu0 0
    %1247 = vmatpush1.bf16.msra.mxu0 %v1185
    %1248 = vmatprep.subr.bf16.mxu0 0
    %1249 = vmatpush1.bf16.msra.mxu0 %v1186
    %1250 = vmatprep.mubr.bf16.mxu0 %v1215
    %1251 = vmatmul.mubr.bf16.gmra.mrb[0].mxu0 %v1208
    %v1252 = vpop.f32.mrb[0].mxu0
    %v1253 = vadd.f32 %v1191, %v1252
    %v1254 = vpop.f32.mrb[0].mxu0
    %v1255 = vpop.f32.mrb[0].mxu0
    %v1256 = vpop.f32.mrb[0].mxu0
    %1257 = vdwg.mxu0
    %v1258 = vtanh.pop %v1253
    %vm1259 = vcmask 123904
    %1260 = vst.msk [vmem:[#allocation2] sm:$0x3] %vm1259, %v1258
    // Predicated region
    $region26: #{tpu_custom_call.1} parent=1 // pred_check
      _
    $region27: #{tpu_custom_call.1} parent=1 // pred_check_branch
      %1262 = sbr.rel (0) target = $region29
    $region28: #{tpu_custom_call.1} parent=1 // pred_region
      %s1264 = ssub.s32 32, 32
      %1265 = vsyncadd [#allocation3], %s1264
      %s1267 = sshll.u32 [#allocation2], 4
      %s1268 = int_to_ptr.vmem [resolvable:$true] %s1267
      %1270 = dma.vmem_to_hbm [thread:$0]  %s1268, 32, %s6, [#allocation3]
    $region29: #{tpu_custom_call.1} parent=1 // pred_fallthru
      _
    // Predicated region
    $region30: #{tpu_custom_call.1} parent=1 // pred_check
      _
    $region31: #{tpu_custom_call.1} parent=1 // pred_check_branch
      %1272 = sbr.rel (0) target = $region33
    $region32: #{tpu_custom_call.1} parent=1 // pred_region
      %1273 = dma.done [#allocation3], 32
    $region33: #{tpu_custom_call.1} parent=1 // pred_fallthru
      _
    %1274 = vsyncpa [#allocation3], 1

</llo_original>
